<compile_context>
chip_gen: v7x
topology: tpu7x:2x2x1
jax: 0.10.0
libtpu: 0.0.40
codegen_flags: <defaults>
</compile_context>

<pallas_src>
import math
from functools import partial

import jax
import jax.numpy as jnp
from jax.experimental import pallas as pl
from jax.experimental.pallas import tpu as pltpu


def _l2norm(w, axis):
    return w / jnp.sqrt(jnp.sum(w * w, axis=axis, keepdims=True) + 1e-12)


def _round_up(x, m):
    return ((x + m - 1) // m) * m


# --------------------------------------------------------------------------------------
# Kernel
# --------------------------------------------------------------------------------------
def _ff_kernel(x_ref, whg_ref, wo_ref, o_ref, acc_ref, *, chunk):
    # x_ref:   (tile_n, d_pad)       input tokens (native dtype; cast to bf16 for MXU)
    # whg_ref: (d_pad, 2*chunk)      [wh_chunk | wg_chunk] bf16, scales folded in
    # wo_ref:  (chunk, d_pad)        output-weight chunk, bf16
    # o_ref:   (tile_n, d_pad)       output tile (input dtype)
    # acc_ref: (tile_n, d_pad) f32   accumulator across inner chunks
    k = pl.program_id(1)

    @pl.when(k == 0)
    def _init():
        acc_ref[...] = jnp.zeros_like(acc_ref)

    x = x_ref[...].astype(whg_ref.dtype)

    # One fused MXU pass for this chunk's hidden+gate, f32 accumulation.
    hg = jnp.dot(x, whg_ref[...], preferred_element_type=jnp.float32)  # (tile_n, 2*chunk)
    hidden = hg[:, :chunk]
    gate = hg[:, chunk:]

    # SiLU(gate) * hidden in f32; reciprocal on the EUP slot.
    sig = pl.reciprocal(1.0 + jnp.exp(-gate), approx=True)
    act = (gate * sig * hidden).astype(wo_ref.dtype)                   # bf16 for the MXU

    acc_ref[...] += jnp.dot(act, wo_ref[...], preferred_element_type=jnp.float32)

    @pl.when(k == pl.num_programs(1) - 1)
    def _store():
        o_ref[...] = acc_ref[...].astype(o_ref.dtype)


# --------------------------------------------------------------------------------------
# One-time weight preparation (hoisted out of the per-forward path)
# --------------------------------------------------------------------------------------
def prepare_ff_weights(params, dim, *, chunk=512, dtype=jnp.bfloat16):
    """L2-normalize, fold scales, pad to lane-aligned shapes, interleave per inner-chunk."""
    wh = _l2norm(params["w_hidden"].astype(jnp.float32), axis=-1)   # (inner, dim), unit rows
    wg = _l2norm(params["w_gate"].astype(jnp.float32), axis=-1)     # (inner, dim), unit rows
    wo = _l2norm(params["w_out"].astype(jnp.float32), axis=0)       # (dim, inner), unit cols
    inner = wh.shape[0]

    hs = params["hidden_scale"].astype(jnp.float32)
    gs = params["gate_scale"].astype(jnp.float32) * jnp.float32(math.sqrt(dim))

    wh_t = wh.T * hs[None, :]                                       # (dim, inner)
    wg_t = wg.T * gs[None, :]                                       # (dim, inner)
    wo_t = wo.T                                                     # (inner, dim)

    d_pad = _round_up(dim, 128)
    inner_pad = _round_up(inner, 128)
    chunk = min(chunk, inner_pad)
    inner_pad = _round_up(inner_pad, chunk)
    n_chunks = inner_pad // chunk

    # Zero-padding is exact: padded inner columns give silu(0)*0 = 0 and padded wo rows
    # contribute 0; padded D rows/columns multiply zero-padded x columns.
    wh_t = jnp.pad(wh_t, ((0, d_pad - dim), (0, inner_pad - inner)))
    wg_t = jnp.pad(wg_t, ((0, d_pad - dim), (0, inner_pad - inner)))
    wo_t = jnp.pad(wo_t, ((0, inner_pad - inner), (0, d_pad - dim)))

    # Interleave per chunk: [wh_c0 | wg_c0 | wh_c1 | wg_c1 | ...] so each grid step's
    # (d_pad, 2*chunk) block is one contiguous, lane-aligned slab.
    wh3 = wh_t.reshape(d_pad, n_chunks, chunk)
    wg3 = wg_t.reshape(d_pad, n_chunks, chunk)
    whg = jnp.concatenate([wh3, wg3], axis=2).reshape(d_pad, n_chunks * 2 * chunk)

    return {
        "whg": whg.astype(dtype),        # (d_pad, 2*inner_pad), chunk-interleaved
        "wo": wo_t.astype(dtype),        # (inner_pad, d_pad)
        "dim": dim,
        "inner": inner,
        "d_pad": d_pad,
        "inner_pad": inner_pad,
        "chunk": chunk,
        "n_chunks": n_chunks,
    }


# --------------------------------------------------------------------------------------
# Forward wrapper
# --------------------------------------------------------------------------------------
def feedforward_pallas(x, prepared, *, tile_n=512):
    """x: (B, S, dim). `prepared`: output of prepare_ff_weights."""
    B, S, D = x.shape
    assert D == prepared["dim"]
    d_pad = prepared["d_pad"]
    chunk = prepared["chunk"]
    n_chunks = prepared["n_chunks"]
    whg = prepared["whg"]
    wo_t = prepared["wo"]

    N = B * S
    x2d = x.reshape(N, D)
    if d_pad != D:
        # Lane alignment of the feature axis; a no-op for real model dims (D % 128 == 0).
        x2d = jnp.pad(x2d, ((0, 0), (0, d_pad - D)))

    # Token tile: multiple of 16 (bf16 sublane packing), 256-aligned default for the MXU.
    tile_n = max(16, min(tile_n, _round_up(N, 16)))
    grid_m = pl.cdiv(N, tile_n)
    grid = (grid_m, n_chunks)

    # --- VMEM budget: double-buffered x/out/weight-chunk tiles + f32 accumulator ---
    xb = x2d.dtype.itemsize
    ob = x.dtype.itemsize
    per_buf = (tile_n * d_pad * xb            # x tile
               + d_pad * 2 * chunk * 2        # whg chunk (bf16)
               + chunk * d_pad * 2            # wo chunk (bf16)
               + tile_n * d_pad * ob)         # out tile
    scratch_bytes = tile_n * d_pad * 4        # f32 accumulator
    interm_bytes = tile_n * 2 * chunk * 4 + tile_n * chunk * 2
    vmem_needed = 2 * per_buf + scratch_bytes + interm_bytes
    try:
        phys = int(pltpu.get_tpu_info().vmem_capacity_bytes)
    except Exception:
        phys = 64 << 20                       # conservative (v7x per-TC)
    vmem_limit = min(int(1.3 * vmem_needed) + (4 << 20), phys - (16 << 20))
    vmem_limit = int(max(vmem_limit, 32 << 20))

    flops = 6 * N * d_pad * prepared["inner_pad"]
    bytes_accessed = (x2d.size * xb + N * d_pad * ob
                      + grid_m * (whg.size + wo_t.size) * 2)
    cost = pl.CostEstimate(flops=int(flops),
                           transcendentals=int(N * prepared["inner_pad"]),
                           bytes_accessed=int(bytes_accessed))

    out2d = pl.pallas_call(
        partial(_ff_kernel, chunk=chunk),
        out_shape=jax.ShapeDtypeStruct((N, d_pad), x.dtype),
        grid_spec=pltpu.PrefetchScalarGridSpec(
            num_scalar_prefetch=0,
            grid=grid,
            in_specs=[
                # x tile: constant across k -> fetched once per token tile.
                pl.BlockSpec((tile_n, d_pad), lambda i, k: (i, 0)),
                # weight chunks streamed along the inner (k) axis, double-buffered.
                pl.BlockSpec((d_pad, 2 * chunk), lambda i, k: (0, k)),
                pl.BlockSpec((chunk, d_pad), lambda i, k: (k, 0)),
            ],
            out_specs=pl.BlockSpec((tile_n, d_pad), lambda i, k: (i, 0)),
            scratch_shapes=[pltpu.VMEM((tile_n, d_pad), jnp.float32)],
        ),
        compiler_params=pltpu.CompilerParams(
            dimension_semantics=("parallel", "arbitrary"),
            vmem_limit_bytes=vmem_limit,
        ),
        cost_estimate=cost,
    )(x2d, whg, wo_t)

    if d_pad != D:
        out2d = out2d[:, :D]
    return out2d.reshape(B, S, D)


# --------------------------------------------------------------------------------------
# Pure-JAX reference (matches the PyTorch forward)
# --------------------------------------------------------------------------------------
def feedforward_ref(x, params, dim):
    wh = _l2norm(params["w_hidden"], axis=-1)
    wg = _l2norm(params["w_gate"], axis=-1)
    wo = _l2norm(params["w_out"], axis=0)
    hidden = jnp.einsum("bsd,id->bsi", x, wh) * params["hidden_scale"]
    gate = jnp.einsum("bsd,id->bsi", x, wg) * params["gate_scale"] * (dim ** 0.5)
    h = jax.nn.silu(gate) * hidden
    return jnp.einsum("bsi,di->bsd", h, wo)


if __name__ == "__main__":
    # Small shapes: dim=32, dim_inner arg = 96 -> int(96*2/3) = 64; dropout=0.0 -> identity.
    B, S, dim = 2, 8, 32
    dim_inner_arg = 96
    dim_inner = int(dim_inner_arg * 2 / 3)  # 64

    key = jax.random.PRNGKey(0)
    k1, k2, k3, k4 = jax.random.split(key, 4)

    params = {
        "w_hidden": jax.random.normal(k1, (dim_inner, dim), jnp.float32) * 0.05,
        "w_gate": jax.random.normal(k2, (dim_inner, dim), jnp.float32) * 0.05,
        "w_out": jax.random.normal(k3, (dim, dim_inner), jnp.float32) * 0.05,
        "hidden_scale": jnp.ones((dim_inner,), jnp.float32),
        "gate_scale": jnp.ones((dim_inner,), jnp.float32),
    }

    x = jax.random.normal(k4, (B, S, dim), jnp.float32)

    prepared = prepare_ff_weights(params, dim)        # one-time weight glue
    out = feedforward_pallas(x, prepared)
    out = jax.block_until_ready(out)

    ref = feedforward_ref(x, params, dim)
    assert out.shape == (B, S, dim)

    # bf16 matmul inputs with f32 accumulation + approx reciprocal -> loosened tolerance.
    max_abs_err = float(jnp.max(jnp.abs(out - ref)))
    denom = float(jnp.max(jnp.abs(ref))) + 1e-6
    assert max_abs_err / denom < 2e-2, f"mismatch vs reference: rel max err {max_abs_err / denom}"

    print("KERNEL_OK")
</pallas_src>

<mosaic_0001>
module attributes {stable_mosaic.version = 11 : i64} {
  func.func @_ff_kernel(%arg0: i32, %arg1: i32, %arg2: memref<16x128xf32, #tpu.memory_space<vmem>>, %arg3: memref<128x256xbf16, #tpu.memory_space<vmem>>, %arg4: memref<128x128xbf16, #tpu.memory_space<vmem>>, %arg5: memref<16x128xf32, #tpu.memory_space<vmem>>, %arg6: memref<16x128xf32, #tpu.memory_space<vmem>>) attributes {dimension_semantics = [#tpu.dimension_semantics<parallel>, #tpu.dimension_semantics<arbitrary>], iteration_bounds = array<i64: 1, 1>, scalar_prefetch = 0 : i64, scratch_operands = 1 : i64, tpu.core_type = #tpu.core_type<tc>, window_params = [{transform_indices = @transform_0, window_bounds = array<i64: 16, 128>}, {transform_indices = @transform_1, window_bounds = array<i64: 128, 256>}, {transform_indices = @transform_2, window_bounds = array<i64: 128, 128>}, {transform_indices = @transform_3, window_bounds = array<i64: 16, 128>}]} {
    %c0_i32 = arith.constant 0 : i32
    %0 = arith.cmpi eq, %arg1, %c0_i32 : i32
    %1 = arith.extui %0 : i1 to i32
    %c0_i32_0 = arith.constant 0 : i32
    %2 = arith.cmpi ne, %1, %c0_i32_0 : i32
    scf.if %2 {
      %cst_15 = arith.constant 0.000000e+00 : f32
      %26 = vector.broadcast %cst_15 : f32 to vector<16x128xf32>
      %c0_16 = arith.constant 0 : index
      %c0_17 = arith.constant 0 : index
      %27 = vector.load %arg6[%c0_16, %c0_17] : memref<16x128xf32, #tpu.memory_space<vmem>>, vector<16x128xf32>
      tpu.vector_store %arg6[%c0_16, %c0_17], %26 {strides = array<i32>} : memref<16x128xf32, #tpu.memory_space<vmem>>, vector<16x128xf32>,
    } else {
    }
    %c0 = arith.constant 0 : index
    %c0_1 = arith.constant 0 : index
    %3 = vector.load %arg2[%c0, %c0_1] : memref<16x128xf32, #tpu.memory_space<vmem>>, vector<16x128xf32>
    %4 = arith.truncf %3 : vector<16x128xf32> to vector<16x128xbf16>
    %c0_2 = arith.constant 0 : index
    %c0_3 = arith.constant 0 : index
    %5 = vector.load %arg3[%c0_2, %c0_3] : memref<128x256xbf16, #tpu.memory_space<vmem>>, vector<128x256xbf16>
    %cst = arith.constant dense<0.000000e+00> : vector<16x256xf32>
    %6 = tpu.matmul %4, %5, %cst {dimension_numbers = #tpu.dot_dimension_numbers<[1], [0], [0], [1], [0, 0, 1, 1], [], []>} : vector<16x128xbf16>, vector<128x256xbf16>, vector<16x256xf32> -> vector<16x256xf32>
    %7 = vector.extract_strided_slice %6 {offsets = [0, 0], sizes = [16, 128], strides = [1, 1]} : vector<16x256xf32> to vector<16x128xf32>
    %8 = vector.extract_strided_slice %6 {offsets = [0, 128], sizes = [16, 128], strides = [1, 1]} : vector<16x256xf32> to vector<16x128xf32>
    %cst_4 = arith.constant 0.000000e+00 : f32
    %9 = vector.broadcast %cst_4 : f32 to vector<16x128xf32>
    %10 = arith.subf %9, %8 : vector<16x128xf32>
    %11 = math.exp %10 : vector<16x128xf32>
    %cst_5 = arith.constant 1.000000e+00 : f32
    %12 = vector.broadcast %cst_5 : f32 to vector<16x128xf32>
    %13 = arith.addf %12, %11 : vector<16x128xf32>
    %14 = tpu.reciprocal %13 {approx = true} : vector<16x128xf32> -> vector<16x128xf32>
    %15 = arith.mulf %8, %14 : vector<16x128xf32>
    %16 = arith.mulf %15, %7 : vector<16x128xf32>
    %17 = arith.truncf %16 : vector<16x128xf32> to vector<16x128xbf16>
    %c0_6 = arith.constant 0 : index
    %c0_7 = arith.constant 0 : index
    %18 = vector.load %arg6[%c0_6, %c0_7] : memref<16x128xf32, #tpu.memory_space<vmem>>, vector<16x128xf32>
    %c0_8 = arith.constant 0 : index
    %c0_9 = arith.constant 0 : index
    %19 = vector.load %arg4[%c0_8, %c0_9] : memref<128x128xbf16, #tpu.memory_space<vmem>>, vector<128x128xbf16>
    %cst_10 = arith.constant dense<0.000000e+00> : vector<16x128xf32>
    %20 = tpu.matmul %17, %19, %cst_10 {dimension_numbers = #tpu.dot_dimension_numbers<[1], [0], [0], [1], [0, 0, 1, 1], [], []>} : vector<16x128xbf16>, vector<128x128xbf16>, vector<16x128xf32> -> vector<16x128xf32>
    %21 = arith.addf %18, %20 : vector<16x128xf32>
    %c0_11 = arith.constant 0 : index
    %c0_12 = arith.constant 0 : index
    %22 = vector.load %arg6[%c0_11, %c0_12] : memref<16x128xf32, #tpu.memory_space<vmem>>, vector<16x128xf32>
    tpu.vector_store %arg6[%c0_11, %c0_12], %21 {strides = array<i32>} : memref<16x128xf32, #tpu.memory_space<vmem>>, vector<16x128xf32>,
    %c0_i32_13 = arith.constant 0 : i32
    %23 = arith.cmpi eq, %arg1, %c0_i32_13 : i32
    %24 = arith.extui %23 : i1 to i32
    %c0_i32_14 = arith.constant 0 : i32
    %25 = arith.cmpi ne, %24, %c0_i32_14 : i32
    scf.if %25 {
      %c0_15 = arith.constant 0 : index
      %c0_16 = arith.constant 0 : index
      %26 = vector.load %arg6[%c0_15, %c0_16] : memref<16x128xf32, #tpu.memory_space<vmem>>, vector<16x128xf32>
      %c0_17 = arith.constant 0 : index
      %c0_18 = arith.constant 0 : index
      %27 = vector.load %arg5[%c0_17, %c0_18] : memref<16x128xf32, #tpu.memory_space<vmem>>, vector<16x128xf32>
      tpu.vector_store %arg5[%c0_17, %c0_18], %26 {strides = array<i32>} : memref<16x128xf32, #tpu.memory_space<vmem>>, vector<16x128xf32>,
    } else {
    }
    return
  }
  func.func @transform_0(%arg0: i32, %arg1: i32) -> (i32, i32) {
    %c0_i32 = arith.constant 0 : i32
    %c0_i32_0 = arith.constant 0 : i32
    return %arg0, %c0_i32 : i32, i32
  }
  func.func @transform_1(%arg0: i32, %arg1: i32) -> (i32, i32) {
    %c0_i32 = arith.constant 0 : i32
    %c0_i32_0 = arith.constant 0 : i32
    return %c0_i32, %arg1 : i32, i32
  }
  func.func @transform_2(%arg0: i32, %arg1: i32) -> (i32, i32) {
    %c0_i32 = arith.constant 0 : i32
    %c0_i32_0 = arith.constant 0 : i32
    return %arg1, %c0_i32 : i32, i32
  }
  func.func @transform_3(%arg0: i32, %arg1: i32) -> (i32, i32) {
    %c0_i32 = arith.constant 0 : i32
    %c0_i32_0 = arith.constant 0 : i32
    return %arg0, %c0_i32 : i32, i32
  }
}

</mosaic_0001>

<llo_original>
// kernel: tpu_custom_call.1
$region0: #{tpu_custom_call.1}
  #allocation0 [shape = 'u32[]', space=smem, size = 0x4, offset = 0x4, fixed_abs, tag = 'smem constant byte address 0x4 - core index']
  #allocation1 [shape = 'u32[144,128]{1,0:T(1,128)}', space=vmem, size = 0x12000, scoped, tag = 'internal scratch']
  #allocation2 [shape = 'f32[16,128]{1,0:T(8,128)}', space=vmem, size = 0x2000, scoped, tag = 'scratch operand']
  %s0 = inlined_call_operand.hbm [shape: f32[16,128], index: 0, kind: input, shape index: {}]
  %s1 = inlined_call_operand.hbm [shape: bf16[128,256], index: 1, kind: input, shape index: {}]
  %s2 = inlined_call_operand.hbm [shape: bf16[128,128], index: 2, kind: input, shape index: {}]
  %s3 = inlined_call_operand.hbm [shape: f32[16,128], index: 3, kind: output, shape index: {}]
  %s4 = sld [smem:[#allocation0]]
  $region42: #{tpu_custom_call.1} parent=0
    _
  %s6 = ssub.s32 1, %s4
  %s7 = scalar_select 0, %s6, %s4
  $region1: #{tpu_custom_call.1} parent=0
    #allocation3 [shape = 'u8[8192]{0}', space=vmem, size = 0x2000, scoped, tag = 'input window, operand 0, single buffered']
    #allocation4 [shape = 's32[1]{0}', space=sflag, size = 0x4, scoped, tag = 'scoped memory for tpu_custom_call.1']
    #allocation5 [shape = 's32[1]{0}', space=sflag, size = 0x4, scoped, tag = 'scoped memory for tpu_custom_call.1']
    #allocation6 [shape = 'u8[65536]{0}', space=vmem, size = 0x10000, scoped, tag = 'input window, operand 1, single buffered']
    #allocation7 [shape = 's32[1]{0}', space=sflag, size = 0x4, scoped, tag = 'scoped memory for tpu_custom_call.1']
    #allocation8 [shape = 'u8[32768]{0}', space=vmem, size = 0x8000, scoped, tag = 'input window, operand 2, single buffered']
    #allocation9 [shape = 'u8[8192]{0}', space=vmem, size = 0x2000, scoped, tag = 'output window, operand 0, single buffered']
    %8 = vsyncpa [#allocation4], 0
    %9 = vsyncpa [#allocation7], 0
    %10 = vsyncpa [#allocation5], 0
    // Predicated region
    $region2: #{tpu_custom_call.1} parent=1 // pred_check
      _
    $region3: #{tpu_custom_call.1} parent=1 // pred_check_branch
      %12 = sbr.rel (0) target = $region5
    $region4: #{tpu_custom_call.1} parent=1 // pred_region
      %s14 = ssub.s32 256, 256
      %15 = vsyncadd [#allocation4], %s14
      %s16 = sshll.u32 [#allocation3], 4
      %s17 = int_to_ptr.vmem [resolvable:$true] %s16
      %22 = dma.hbm_to_vmem [thread:$0]  %s0, 256, %s17, [#allocation4], 128, 128, 8
    $region5: #{tpu_custom_call.1} parent=1 // pred_fallthru
      _
    // Predicated region
    $region6: #{tpu_custom_call.1} parent=1 // pred_check
      _
    $region7: #{tpu_custom_call.1} parent=1 // pred_check_branch
      %24 = sbr.rel (0) target = $region9
    $region8: #{tpu_custom_call.1} parent=1 // pred_region
      %s26 = ssub.s32 2048, 2048
      %27 = vsyncadd [#allocation7], %s26
      %s28 = sshll.u32 [#allocation6], 4
      %s29 = int_to_ptr.vmem [resolvable:$true] %s28
      %34 = dma.hbm_to_vmem [thread:$0]  %s1, 2048, %s29, [#allocation7], 128, 128, 8
    $region9: #{tpu_custom_call.1} parent=1 // pred_fallthru
      _
    // Predicated region
    $region10: #{tpu_custom_call.1} parent=1 // pred_check
      _
    $region11: #{tpu_custom_call.1} parent=1 // pred_check_branch
      %36 = sbr.rel (0) target = $region13
    $region12: #{tpu_custom_call.1} parent=1 // pred_region
      %s38 = ssub.s32 1024, 1024
      %39 = vsyncadd [#allocation7], %s38
      %s40 = sshll.u32 [#allocation8], 4
      %s41 = int_to_ptr.vmem [resolvable:$true] %s40
      %46 = dma.hbm_to_vmem [thread:$0]  %s2, 1024, %s41, [#allocation7], 64, 64, 4
    $region13: #{tpu_custom_call.1} parent=1 // pred_fallthru
      _
    // Predicated region
    $region14: #{tpu_custom_call.1} parent=1 // pred_check
      _
    $region15: #{tpu_custom_call.1} parent=1 // pred_check_branch
      %48 = sbr.rel (0) target = $region17
    $region16: #{tpu_custom_call.1} parent=1 // pred_region
      %49 = dma.done [#allocation4], 256
    $region17: #{tpu_custom_call.1} parent=1 // pred_fallthru
      _
    // Predicated region
    $region18: #{tpu_custom_call.1} parent=1 // pred_check
      _
    $region19: #{tpu_custom_call.1} parent=1 // pred_check_branch
      %51 = sbr.rel (0) target = $region21
    $region20: #{tpu_custom_call.1} parent=1 // pred_region
      %52 = dma.done [#allocation7], 2048
    $region21: #{tpu_custom_call.1} parent=1 // pred_fallthru
      _
    // Predicated region
    $region22: #{tpu_custom_call.1} parent=1 // pred_check
      _
    $region23: #{tpu_custom_call.1} parent=1 // pred_check_branch
      %54 = sbr.rel (0) target = $region25
    $region24: #{tpu_custom_call.1} parent=1 // pred_region
      %55 = dma.done [#allocation7], 1024
    $region25: #{tpu_custom_call.1} parent=1 // pred_fallthru
      _
    %p57 = scmp.eq.s32.totalorder 0, 0
    // Predicated region
    $region26: #{tpu_custom_call.1} parent=1 // pred_check
      %p58 = pneg %p57
    $region27: #{tpu_custom_call.1} parent=1 // pred_check_branch
      %60 = sbr.rel (%p58) target = $region29
    $region28: #{tpu_custom_call.1} parent=1 // pred_region
      %61 = vst [vmem:[#allocation2] sm:$0xff] 0.0
      %62 = vst [vmem:[#allocation2 + $0x8] sm:$0xff] 0.0
    $region29: #{tpu_custom_call.1} parent=1 // pred_fallthru
      _
    %v63 = vld [vmem:[#allocation3] sm:$0xff]
    %v64 = vld [vmem:[#allocation3 + $0x8] sm:$0xff]
    %v65 = vpack.c.bf16 %v64, %v63
    %v66 = vld [vmem:[#allocation6] sm:$0xff]
    %v67 = vld [vmem:[#allocation6 + $0x8] sm:$0xff]
    %v68 = vld [vmem:[#allocation6 + $0x10] sm:$0xff]
    %v69 = vld [vmem:[#allocation6 + $0x18] sm:$0xff]
    %v70 = vld [vmem:[#allocation6 + $0x20] sm:$0xff]
    %v71 = vld [vmem:[#allocation6 + $0x28] sm:$0xff]
    %v72 = vld [vmem:[#allocation6 + $0x30] sm:$0xff]
    %v73 = vld [vmem:[#allocation6 + $0x38] sm:$0xff]
    %v74 = vld [vmem:[#allocation6 + $0x40] sm:$0xff]
    %v75 = vld [vmem:[#allocation6 + $0x48] sm:$0xff]
    %v76 = vld [vmem:[#allocation6 + $0x50] sm:$0xff]
    %v77 = vld [vmem:[#allocation6 + $0x58] sm:$0xff]
    %v78 = vld [vmem:[#allocation6 + $0x60] sm:$0xff]
    %v79 = vld [vmem:[#allocation6 + $0x68] sm:$0xff]
    %v80 = vld [vmem:[#allocation6 + $0x70] sm:$0xff]
    %v81 = vld [vmem:[#allocation6 + $0x78] sm:$0xff]
    %v98 = vunpack.c.l.b16 %v66
    %v99 = vunpack.c.h.b16 %v66
    %v100 = vunpack.c.l.b16 %v67
    %v101 = vunpack.c.h.b16 %v67
    %v102 = vunpack.c.l.b16 %v68
    %v103 = vunpack.c.h.b16 %v68
    %v104 = vunpack.c.l.b16 %v69
    %v105 = vunpack.c.h.b16 %v69
    %v106 = vunpack.c.l.b16 %v70
    %v107 = vunpack.c.h.b16 %v70
    %v108 = vunpack.c.l.b16 %v71
    %v109 = vunpack.c.h.b16 %v71
    %v110 = vunpack.c.l.b16 %v72
    %v111 = vunpack.c.h.b16 %v72
    %v112 = vunpack.c.l.b16 %v73
    %v113 = vunpack.c.h.b16 %v73
    %v114 = vunpack.c.l.b16 %v74
    %v115 = vunpack.c.h.b16 %v74
    %v116 = vunpack.c.l.b16 %v75
    %v117 = vunpack.c.h.b16 %v75
    %v118 = vunpack.c.l.b16 %v76
    %v119 = vunpack.c.h.b16 %v76
    %v120 = vunpack.c.l.b16 %v77
    %v121 = vunpack.c.h.b16 %v77
    %v122 = vunpack.c.l.b16 %v78
    %v123 = vunpack.c.h.b16 %v78
    %v124 = vunpack.c.l.b16 %v79
    %v125 = vunpack.c.h.b16 %v79
    %v126 = vunpack.c.l.b16 %v80
    %v127 = vunpack.c.h.b16 %v80
    %v128 = vunpack.c.l.b16 %v81
    %v129 = vunpack.c.h.b16 %v81
    %v130 = vpack.c.b16 %v100, %v98
    %v131 = vpack.c.b16 %v101, %v99
    %v132 = vpack.c.b16 %v104, %v102
    %v133 = vpack.c.b16 %v105, %v103
    %v134 = vpack.c.b16 %v108, %v106
    %v135 = vpack.c.b16 %v109, %v107
    %v136 = vpack.c.b16 %v112, %v110
    %v137 = vpack.c.b16 %v113, %v111
    %v138 = vpack.c.b16 %v116, %v114
    %v139 = vpack.c.b16 %v117, %v115
    %v140 = vpack.c.b16 %v120, %v118
    %v141 = vpack.c.b16 %v121, %v119
    %v142 = vpack.c.b16 %v124, %v122
    %v143 = vpack.c.b16 %v125, %v123
    %v144 = vpack.c.b16 %v128, %v126
    %v145 = vpack.c.b16 %v129, %v127
    %162 = vmatprep.subr.bf16.mxu0 %v131
    %163 = vmatpush1.bf16.msra.mxu0 %v130
    %164 = vmatprep.subr.bf16.mxu0 %v133
    %165 = vmatpush1.bf16.msra.mxu0 %v132
    %166 = vmatprep.subr.bf16.mxu0 %v135
    %167 = vmatpush1.bf16.msra.mxu0 %v134
    %168 = vmatprep.subr.bf16.mxu0 %v137
    %169 = vmatpush1.bf16.msra.mxu0 %v136
    %170 = vmatprep.subr.bf16.mxu0 %v139
    %171 = vmatpush1.bf16.msra.mxu0 %v138
    %172 = vmatprep.subr.bf16.mxu0 %v141
    %173 = vmatpush1.bf16.msra.mxu0 %v140
    %174 = vmatprep.subr.bf16.mxu0 %v143
    %175 = vmatpush1.bf16.msra.mxu0 %v142
    %176 = vmatprep.subr.bf16.mxu0 %v145
    %177 = vmatpush1.bf16.msra.mxu0 %v144
    %178 = vmatprep.subr.bf16.mxu0 0
    %179 = vmatpush1.bf16.msra.mxu0 0
    %180 = vmatprep.subr.bf16.mxu0 0
    %181 = vmatpush1.bf16.msra.mxu0 0
    %182 = vmatprep.subr.bf16.mxu0 0
    %183 = vmatpush1.bf16.msra.mxu0 0
    %184 = vmatprep.subr.bf16.mxu0 0
    %185 = vmatpush1.bf16.msra.mxu0 0
    %186 = vmatprep.subr.bf16.mxu0 0
    %187 = vmatpush1.bf16.msra.mxu0 0
    %188 = vmatprep.subr.bf16.mxu0 0
    %189 = vmatpush1.bf16.msra.mxu0 0
    %190 = vmatprep.subr.bf16.mxu0 0
    %191 = vmatpush1.bf16.msra.mxu0 0
    %192 = vmatprep.subr.bf16.mxu0 0
    %193 = vmatpush1.bf16.msra.mxu0 0
    %194 = vmatprep.mubr.bf16.mxu0 0
    %195 = vmatmul.mubr.bf16.gmra.mrb[0].mxu0 %v65
    %v196 = vpop.f32.mrb[0].mxu0
    %v197 = vadd.f32 0.0, %v196
    %v198 = vpop.f32.mrb[0].mxu0
    %v199 = vadd.f32 0.0, %v198
    %v200 = vpop.f32.mrb[0].mxu0
    %v201 = vadd.f32 0.0, %v200
    %v202 = vpop.f32.mrb[0].mxu0
    %v203 = vadd.f32 0.0, %v202
    %204 = vdwg.mxu0
    %v205 = vsub.f32 0.0, %v199
    %v206 = vsub.f32 0.0, %v203
    %v207 = vmul.f32 %v205, 1.442695
    %v208 = vpow.pop %v207
    %v209 = vmul.f32 %v206, 1.442695
    %v210 = vpow.pop %v209
    %v211 = vadd.f32 %v208, 1.0
    %v212 = vadd.f32 %v210, 1.0
    %v213 = vrcp.pop %v211
    %v214 = vrcp.pop %v212
    %v215 = vmul.f32 %v199, %v213
    %v216 = vmul.f32 %v203, %v214
    %v217 = vmul.f32 %v215, %v197
    %v218 = vmul.f32 %v216, %v201
    %v219 = vpack.c.bf16 %v218, %v217
    %v220 = vld [vmem:[#allocation2] sm:$0xff]
    %v221 = vld [vmem:[#allocation2 + $0x8] sm:$0xff]
    %v222 = vld [vmem:[#allocation8] sm:$0xf]
    %v223 = vld [vmem:[#allocation8 + $0x4] sm:$0xf]
    %v224 = vld [vmem:[#allocation8 + $0x8] sm:$0xf]
    %v225 = vld [vmem:[#allocation8 + $0xc] sm:$0xf]
    %v226 = vld [vmem:[#allocation8 + $0x10] sm:$0xf]
    %v227 = vld [vmem:[#allocation8 + $0x14] sm:$0xf]
    %v228 = vld [vmem:[#allocation8 + $0x18] sm:$0xf]
    %v229 = vld [vmem:[#allocation8 + $0x1c] sm:$0xf]
    %v230 = vld [vmem:[#allocation8 + $0x20] sm:$0xf]
    %v231 = vld [vmem:[#allocation8 + $0x24] sm:$0xf]
    %v232 = vld [vmem:[#allocation8 + $0x28] sm:$0xf]
    %v233 = vld [vmem:[#allocation8 + $0x2c] sm:$0xf]
    %v234 = vld [vmem:[#allocation8 + $0x30] sm:$0xf]
    %v235 = vld [vmem:[#allocation8 + $0x34] sm:$0xf]
    %v236 = vld [vmem:[#allocation8 + $0x38] sm:$0xf]
    %v237 = vld [vmem:[#allocation8 + $0x3c] sm:$0xf]
    %v254 = vunpack.c.l.b16 %v222
    %v255 = vunpack.c.l.b16 %v223
    %v256 = vunpack.c.l.b16 %v224
    %v257 = vunpack.c.l.b16 %v225
    %v258 = vunpack.c.l.b16 %v226
    %v259 = vunpack.c.l.b16 %v227
    %v260 = vunpack.c.l.b16 %v228
    %v261 = vunpack.c.l.b16 %v229
    %v262 = vunpack.c.l.b16 %v230
    %v263 = vunpack.c.l.b16 %v231
    %v264 = vunpack.c.l.b16 %v232
    %v265 = vunpack.c.l.b16 %v233
    %v266 = vunpack.c.l.b16 %v234
    %v267 = vunpack.c.l.b16 %v235
    %v268 = vunpack.c.l.b16 %v236
    %v269 = vunpack.c.l.b16 %v237
    %v270 = vpack.c.b16 %v255, %v254
    %v271 = vpack.c.b16 %v257, %v256
    %v272 = vpack.c.b16 %v259, %v258
    %v273 = vpack.c.b16 %v261, %v260
    %v274 = vpack.c.b16 %v263, %v262
    %v275 = vpack.c.b16 %v265, %v264
    %v276 = vpack.c.b16 %v267, %v266
    %v277 = vpack.c.b16 %v269, %v268
    %286 = vmatprep.subr.bf16.mxu0 0
    %287 = vmatpush1.bf16.msra.mxu0 %v270
    %288 = vmatprep.subr.bf16.mxu0 0
    %289 = vmatpush1.bf16.msra.mxu0 %v271
    %290 = vmatprep.subr.bf16.mxu0 0
    %291 = vmatpush1.bf16.msra.mxu0 %v272
    %292 = vmatprep.subr.bf16.mxu0 0
    %293 = vmatpush1.bf16.msra.mxu0 %v273
    %294 = vmatprep.subr.bf16.mxu0 0
    %295 = vmatpush1.bf16.msra.mxu0 %v274
    %296 = vmatprep.subr.bf16.mxu0 0
    %297 = vmatpush1.bf16.msra.mxu0 %v275
    %298 = vmatprep.subr.bf16.mxu0 0
    %299 = vmatpush1.bf16.msra.mxu0 %v276
    %300 = vmatprep.subr.bf16.mxu0 0
    %301 = vmatpush1.bf16.msra.mxu0 %v277
    %302 = vmatprep.subr.bf16.mxu0 0
    %303 = vmatpush1.bf16.msra.mxu0 0
    %304 = vmatprep.subr.bf16.mxu0 0
    %305 = vmatpush1.bf16.msra.mxu0 0
    %306 = vmatprep.subr.bf16.mxu0 0
    %307 = vmatpush1.bf16.msra.mxu0 0
    %308 = vmatprep.subr.bf16.mxu0 0
    %309 = vmatpush1.bf16.msra.mxu0 0
    %310 = vmatprep.subr.bf16.mxu0 0
    %311 = vmatpush1.bf16.msra.mxu0 0
    %312 = vmatprep.subr.bf16.mxu0 0
    %313 = vmatpush1.bf16.msra.mxu0 0
    %314 = vmatprep.subr.bf16.mxu0 0
    %315 = vmatpush1.bf16.msra.mxu0 0
    %316 = vmatprep.subr.bf16.mxu0 0
    %317 = vmatpush1.bf16.msra.mxu0 0
    %318 = vmatprep.mubr.bf16.mxu0 0
    %319 = vmatmul.mubr.bf16.gmra.mrb[0].mxu0 %v219
    %v320 = vpop.f32.mrb[0].mxu0
    %v321 = vadd.f32 0.0, %v320
    %v322 = vpop.f32.mrb[0].mxu0
    %v323 = vpop.f32.mrb[0].mxu0
    %v324 = vadd.f32 0.0, %v323
    %v325 = vpop.f32.mrb[0].mxu0
    %326 = vdwg.mxu0
    %v327 = vadd.f32 %v220, %v321
    %v328 = vadd.f32 %v221, %v324
    %329 = vst [vmem:[#allocation2] sm:$0xff] %v327
    %330 = vst [vmem:[#allocation2 + $0x8] sm:$0xff] %v328
    // Predicated region
    $region30: #{tpu_custom_call.1} parent=1 // pred_check
      %p331 = pneg %p57
    $region31: #{tpu_custom_call.1} parent=1 // pred_check_branch
      %333 = sbr.rel (%p331) target = $region33
    $region32: #{tpu_custom_call.1} parent=1 // pred_region
      %v334 = vld [vmem:[#allocation2] sm:$0xff]
      %v335 = vld [vmem:[#allocation2 + $0x8] sm:$0xff]
      %336 = vst [vmem:[#allocation9] sm:$0xff] %v334
      %337 = vst [vmem:[#allocation9 + $0x8] sm:$0xff] %v335
    $region33: #{tpu_custom_call.1} parent=1 // pred_fallthru
      _
    // Predicated region
    $region34: #{tpu_custom_call.1} parent=1 // pred_check
      _
    $region35: #{tpu_custom_call.1} parent=1 // pred_check_branch
      %339 = sbr.rel (0) target = $region37
    $region36: #{tpu_custom_call.1} parent=1 // pred_region
      %s341 = ssub.s32 256, 256
      %342 = vsyncadd [#allocation5], %s341
      %s343 = sshll.u32 [#allocation9], 4
      %s344 = int_to_ptr.vmem [resolvable:$true] %s343
      %349 = dma.vmem_to_hbm [thread:$0]  %s344, 256, %s3, [#allocation5], 128, 128, 8
    $region37: #{tpu_custom_call.1} parent=1 // pred_fallthru
      _
    // Predicated region
    $region38: #{tpu_custom_call.1} parent=1 // pred_check
      _
    $region39: #{tpu_custom_call.1} parent=1 // pred_check_branch
      %351 = sbr.rel (0) target = $region41
    $region40: #{tpu_custom_call.1} parent=1 // pred_region
      %352 = dma.done [#allocation5], 256
    $region41: #{tpu_custom_call.1} parent=1 // pred_fallthru
      _
    %353 = vsyncpa [#allocation4], 1
    %354 = vsyncpa [#allocation7], 1
    %355 = vsyncpa [#allocation5], 1

</llo_original>
